<compile_context>
chip_gen: v5e
topology: v5e:2x2
jax: 0.10.0
libtpu: 0.0.40
codegen_flags: <defaults>
</compile_context>

<pallas_src>
import functools

import jax
import jax.numpy as jnp
from jax.experimental import pallas as pl
from jax.experimental.pallas import tpu as pltpu


INPUT_SIZE = 784            # forward() hard-codes view(-1, 784)
HIDDEN_SIZES = "32,32"      # comma-separated, as in the module's __init__
OUTPUT_SIZE = 10


def _round_up(n, m):
    return ((n + m - 1) // m) * m


def _mlp_kernel(n_layers, x_ref, *refs):
    """refs = (W1, b1, W2, b2, ..., Wout, bout, out_ref).

    x_ref:  (TM, 784) bf16 tile of the batch.
    W_i:    (in_i, out_i) bf16 (pre-transposed so the kernel does x @ W).
    b_i:    (1, out_i) f32.
    out_ref:(C, TM) f32 — log_softmax over classes, already transposed (lane-dense store).

    ReLU after every layer except the final (output) layer, matching the PyTorch forward.
    """
    out_ref = refs[-1]
    param_refs = refs[:-1]

    h = x_ref[...]                                  # bf16 (TM, in)
    acc = None
    for i in range(n_layers):
        w = param_refs[2 * i][...]                  # bf16 (in_i, out_i)
        b = param_refs[2 * i + 1][...]              # f32  (1, out_i)
        acc = jnp.dot(h, w, preferred_element_type=jnp.float32) + b   # f32 (TM, out_i)
        if i < n_layers - 1:                        # hidden layers get ReLU
            acc = jnp.maximum(acc, 0.0)
            h = acc.astype(jnp.bfloat16)            # bf16 back into the MXU

    # log_softmax over the class axis (last axis of (TM, C)), numerically stable.
    m = jnp.max(acc, axis=-1, keepdims=True)
    s = acc - m
    lse = jnp.log(jnp.sum(jnp.exp(s), axis=-1, keepdims=True))
    logp = s - lse                                  # (TM, C)

    # Fused transpose: write a lane-dense (C, TM) tile (C=10 is the full first dim,
    # TM is a multiple of 128 -> unmasked vst).
    out_ref[...] = logp.T.astype(out_ref.dtype)


def init_params(key, input_size, hidden_sizes_str, output_size):
    """Deterministic init mimicking torch.nn.Linear defaults (uniform +/- 1/sqrt(fan_in)).

    Returns a flat list [W1, b1, W2, b2, ..., Wout, bout] with W stored as (in, out) bf16
    (resident in VMEM, fed straight to the MXU) and b as (1, out) f32.
    """
    hidden = [int(s) for s in hidden_sizes_str.split(",")]
    dims = [input_size] + hidden + [output_size]
    params = []
    for i in range(len(dims) - 1):
        fan_in, fan_out = dims[i], dims[i + 1]
        key, kw, kb = jax.random.split(key, 3)
        bound = 1.0 / (fan_in ** 0.5)
        w = jax.random.uniform(kw, (fan_in, fan_out), jnp.float32, -bound, bound)
        b = jax.random.uniform(kb, (1, fan_out), jnp.float32, -bound, bound)
        params += [w.astype(jnp.bfloat16), b]
    return params


@functools.partial(jax.jit, static_argnames=("output_size",))
def custom_mlp_forward(x, params, *, output_size):
    """Pallas-backed forward. Returns (None, log_softmax_output) with shape (C, B)."""
    x2d = x.reshape(-1, INPUT_SIZE).astype(jnp.bfloat16)   # x.view(-1, 784), bf16 streaming
    batch = x2d.shape[0]
    n_layers = len(params) // 2

    # Batch tile: multiple of 128 (fills MXU M passes on all generations), capped at 1024
    # so a double-buffered input tile stays small on every VMEM budget (v5e 16 MiB scoped,
    # v7x 64 MiB physical).
    tm = min(1024, _round_up(batch, 128))
    batch_p = _round_up(batch, tm)
    if batch_p != batch:
        x2d = jnp.pad(x2d, ((0, batch_p - batch), (0, 0)))
    grid = (batch_p // tm,)

    kernel = functools.partial(_mlp_kernel, n_layers)

    # x streams per grid step; params stay VMEM-resident (constant block index).
    in_specs = [pl.BlockSpec((tm, INPUT_SIZE), lambda i: (i, 0))]
    for p in params:
        in_specs.append(pl.BlockSpec(p.shape, lambda i: (0, 0)))
    out_spec = pl.BlockSpec((output_size, tm), lambda i: (0, i))

    # Advisory cost hint for XLA's scheduler around the custom call.
    hidden_dims = [p.shape for p in params[0::2]]
    flops = 2 * batch_p * sum(fi * fo for (fi, fo) in hidden_dims)
    bytes_accessed = (
        batch_p * INPUT_SIZE * 2                      # bf16 x stream
        + output_size * batch_p * 4                   # f32 output
        + sum(p.size * p.dtype.itemsize for p in params)
    )
    cost = pl.CostEstimate(
        flops=flops,
        transcendentals=batch_p * (output_size + 1),  # exp per class + log per row
        bytes_accessed=bytes_accessed,
    )

    out = pl.pallas_call(
        kernel,
        out_shape=jax.ShapeDtypeStruct((output_size, batch_p), jnp.float32),
        grid=grid,
        in_specs=in_specs,
        out_specs=out_spec,
        compiler_params=pltpu.CompilerParams(
            dimension_semantics=("parallel",),        # megacore split on v7x; no-op on v5e/v6e
        ),
        cost_estimate=cost,
    )(x2d, *params)

    # Kernel already produced the transposed (C, B_padded) log-softmax; crop padding only.
    return None, out[:, :batch]


if __name__ == "__main__":
    key = jax.random.PRNGKey(0)
    k_params, k_x = jax.random.split(key)

    params = init_params(k_params, INPUT_SIZE, HIDDEN_SIZES, OUTPUT_SIZE)

    # Small deterministic example input: batch of 2 MNIST-shaped images (NCHW).
    x = jax.random.normal(k_x, (2, 1, 28, 28), dtype=jnp.float32)

    _, log_probs = custom_mlp_forward(x, params, output_size=OUTPUT_SIZE)
    log_probs = jax.block_until_ready(log_probs)

    assert log_probs.shape == (OUTPUT_SIZE, 2), log_probs.shape
    # log_softmax sanity: exp-sums over the class axis (dim 0) must be ~1.
    sums = jnp.exp(log_probs).sum(axis=0)
    assert jnp.allclose(sums, jnp.ones_like(sums), atol=1e-3), sums

    print("KERNEL_OK")
</pallas_src>

<mosaic_0001>
module attributes {stable_mosaic.version = 11 : i64} {
  func.func @_mlp_kernel(%arg0: i32, %arg1: memref<128x784xbf16, #tpu.memory_space<vmem>>, %arg2: memref<784x32xbf16, #tpu.memory_space<vmem>>, %arg3: memref<1x32xf32, #tpu.memory_space<vmem>>, %arg4: memref<32x32xbf16, #tpu.memory_space<vmem>>, %arg5: memref<1x32xf32, #tpu.memory_space<vmem>>, %arg6: memref<32x10xbf16, #tpu.memory_space<vmem>>, %arg7: memref<1x10xf32, #tpu.memory_space<vmem>>, %arg8: memref<10x128xf32, #tpu.memory_space<vmem>>) attributes {dimension_semantics = [#tpu.dimension_semantics<parallel>], iteration_bounds = array<i64: 1>, scalar_prefetch = 0 : i64, scratch_operands = 0 : i64, tpu.core_type = #tpu.core_type<tc>, window_params = [{transform_indices = @transform_0, window_bounds = array<i64: 128, 784>}, {pipeline_mode = #tpu.pipeline_mode<synchronous>, transform_indices = @transform_1, window_bounds = array<i64: 784, 32>}, {pipeline_mode = #tpu.pipeline_mode<synchronous>, transform_indices = @transform_2, window_bounds = array<i64: 1, 32>}, {pipeline_mode = #tpu.pipeline_mode<synchronous>, transform_indices = @transform_3, window_bounds = array<i64: 32, 32>}, {pipeline_mode = #tpu.pipeline_mode<synchronous>, transform_indices = @transform_4, window_bounds = array<i64: 1, 32>}, {pipeline_mode = #tpu.pipeline_mode<synchronous>, transform_indices = @transform_5, window_bounds = array<i64: 32, 10>}, {pipeline_mode = #tpu.pipeline_mode<synchronous>, transform_indices = @transform_6, window_bounds = array<i64: 1, 10>}, {transform_indices = @transform_7, window_bounds = array<i64: 10, 128>}]} {
    %c0 = arith.constant 0 : index
    %c0_0 = arith.constant 0 : index
    %0 = vector.load %arg1[%c0, %c0_0] : memref<128x784xbf16, #tpu.memory_space<vmem>>, vector<128x784xbf16>
    %c0_1 = arith.constant 0 : index
    %c0_2 = arith.constant 0 : index
    %1 = vector.load %arg2[%c0_1, %c0_2] : memref<784x32xbf16, #tpu.memory_space<vmem>>, vector<784x32xbf16>
    %c0_3 = arith.constant 0 : index
    %c0_4 = arith.constant 0 : index
    %2 = vector.load %arg3[%c0_3, %c0_4] : memref<1x32xf32, #tpu.memory_space<vmem>>, vector<1x32xf32>
    %cst = arith.constant dense<0.000000e+00> : vector<128x32xf32>
    %3 = tpu.matmul %0, %1, %cst {dimension_numbers = #tpu.dot_dimension_numbers<[1], [0], [0], [1], [0, 0, 1, 1], [], []>} : vector<128x784xbf16>, vector<784x32xbf16>, vector<128x32xf32> -> vector<128x32xf32>
    %4 = vector.broadcast %2 : vector<1x32xf32> to vector<128x32xf32>
    %5 = arith.addf %3, %4 : vector<128x32xf32>
    %cst_5 = arith.constant 0.000000e+00 : f32
    %6 = vector.broadcast %cst_5 : f32 to vector<128x32xf32>
    %7 = arith.maximumf %5, %6 : vector<128x32xf32>
    %8 = arith.truncf %7 : vector<128x32xf32> to vector<128x32xbf16>
    %c0_6 = arith.constant 0 : index
    %c0_7 = arith.constant 0 : index
    %9 = vector.load %arg4[%c0_6, %c0_7] : memref<32x32xbf16, #tpu.memory_space<vmem>>, vector<32x32xbf16>
    %c0_8 = arith.constant 0 : index
    %c0_9 = arith.constant 0 : index
    %10 = vector.load %arg5[%c0_8, %c0_9] : memref<1x32xf32, #tpu.memory_space<vmem>>, vector<1x32xf32>
    %cst_10 = arith.constant dense<0.000000e+00> : vector<128x32xf32>
    %11 = tpu.matmul %8, %9, %cst_10 {dimension_numbers = #tpu.dot_dimension_numbers<[1], [0], [0], [1], [0, 0, 1, 1], [], []>} : vector<128x32xbf16>, vector<32x32xbf16>, vector<128x32xf32> -> vector<128x32xf32>
    %12 = vector.broadcast %10 : vector<1x32xf32> to vector<128x32xf32>
    %13 = arith.addf %11, %12 : vector<128x32xf32>
    %cst_11 = arith.constant 0.000000e+00 : f32
    %14 = vector.broadcast %cst_11 : f32 to vector<128x32xf32>
    %15 = arith.maximumf %13, %14 : vector<128x32xf32>
    %16 = arith.truncf %15 : vector<128x32xf32> to vector<128x32xbf16>
    %c0_12 = arith.constant 0 : index
    %c0_13 = arith.constant 0 : index
    %17 = vector.load %arg6[%c0_12, %c0_13] : memref<32x10xbf16, #tpu.memory_space<vmem>>, vector<32x10xbf16>
    %c0_14 = arith.constant 0 : index
    %c0_15 = arith.constant 0 : index
    %18 = vector.load %arg7[%c0_14, %c0_15] : memref<1x10xf32, #tpu.memory_space<vmem>>, vector<1x10xf32>
    %cst_16 = arith.constant dense<0.000000e+00> : vector<128x10xf32>
    %19 = tpu.matmul %16, %17, %cst_16 {dimension_numbers = #tpu.dot_dimension_numbers<[1], [0], [0], [1], [0, 0, 1, 1], [], []>} : vector<128x32xbf16>, vector<32x10xbf16>, vector<128x10xf32> -> vector<128x10xf32>
    %20 = vector.broadcast %18 : vector<1x10xf32> to vector<128x10xf32>
    %21 = arith.addf %19, %20 : vector<128x10xf32>
    %cst_17 = arith.constant dense<0xFF800000> : vector<128xf32>
    %22 = vector.multi_reduction <maximumf>, %21, %cst_17 [1] : vector<128x10xf32> to vector<128xf32>
    %23 = vector.shape_cast %22 : vector<128xf32> to vector<128x1xf32>
    %24 = vector.broadcast %23 : vector<128x1xf32> to vector<128x10xf32>
    %25 = arith.subf %21, %24 : vector<128x10xf32>
    %26 = math.exp %25 : vector<128x10xf32>
    %cst_18 = arith.constant dense<0.000000e+00> : vector<128xf32>
    %27 = vector.multi_reduction <add>, %26, %cst_18 [1] : vector<128x10xf32> to vector<128xf32>
    %28 = vector.shape_cast %27 : vector<128xf32> to vector<128x1xf32>
    %29 = math.log %28 : vector<128x1xf32>
    %30 = vector.broadcast %29 : vector<128x1xf32> to vector<128x10xf32>
    %31 = arith.subf %25, %30 : vector<128x10xf32>
    %32 = tpu.transpose %31, [1, 0] : vector<128x10xf32> -> vector<10x128xf32>
    %c0_19 = arith.constant 0 : index
    %c0_20 = arith.constant 0 : index
    %33 = vector.load %arg8[%c0_19, %c0_20] : memref<10x128xf32, #tpu.memory_space<vmem>>, vector<10x128xf32>
    tpu.vector_store %arg8[%c0_19, %c0_20], %32 {strides = array<i32>} : memref<10x128xf32, #tpu.memory_space<vmem>>, vector<10x128xf32>,
    return
  }
  func.func @transform_0(%arg0: i32) -> (i32, i32) {
    %c0_i32 = arith.constant 0 : i32
    %c0_i32_0 = arith.constant 0 : i32
    return %arg0, %c0_i32 : i32, i32
  }
  func.func @transform_1(%arg0: i32) -> (i32, i32) {
    %c0_i32 = arith.constant 0 : i32
    %c0_i32_0 = arith.constant 0 : i32
    %c0_i32_1 = arith.constant 0 : i32
    return %c0_i32, %c0_i32_0 : i32, i32
  }
  func.func @transform_2(%arg0: i32) -> (i32, i32) {
    %c0_i32 = arith.constant 0 : i32
    %c0_i32_0 = arith.constant 0 : i32
    %c0_i32_1 = arith.constant 0 : i32
    return %c0_i32, %c0_i32_0 : i32, i32
  }
  func.func @transform_3(%arg0: i32) -> (i32, i32) {
    %c0_i32 = arith.constant 0 : i32
    %c0_i32_0 = arith.constant 0 : i32
    %c0_i32_1 = arith.constant 0 : i32
    return %c0_i32, %c0_i32_0 : i32, i32
  }
  func.func @transform_4(%arg0: i32) -> (i32, i32) {
    %c0_i32 = arith.constant 0 : i32
    %c0_i32_0 = arith.constant 0 : i32
    %c0_i32_1 = arith.constant 0 : i32
    return %c0_i32, %c0_i32_0 : i32, i32
  }
  func.func @transform_5(%arg0: i32) -> (i32, i32) {
    %c0_i32 = arith.constant 0 : i32
    %c0_i32_0 = arith.constant 0 : i32
    %c0_i32_1 = arith.constant 0 : i32
    return %c0_i32, %c0_i32_0 : i32, i32
  }
  func.func @transform_6(%arg0: i32) -> (i32, i32) {
    %c0_i32 = arith.constant 0 : i32
    %c0_i32_0 = arith.constant 0 : i32
    %c0_i32_1 = arith.constant 0 : i32
    return %c0_i32, %c0_i32_0 : i32, i32
  }
  func.func @transform_7(%arg0: i32) -> (i32, i32) {
    %c0_i32 = arith.constant 0 : i32
    %c0_i32_0 = arith.constant 0 : i32
    return %c0_i32, %arg0 : i32, i32
  }
}

</mosaic_0001>

<llo_original>
// kernel: custom_mlp_forward.1
$region0: #{custom_mlp_forward.1}
  #allocation0 [shape = 'u32[]', space=smem, size = 0x4, offset = 0x4, fixed_abs, tag = 'smem constant byte address 0x4 - core index']
  #allocation1 [shape = 'u32[72,128]{1,0:T(1,128)}', space=vmem, size = 0x9000, scoped, tag = 'internal scratch']
  %s0 = inlined_call_operand.vmem [shape: bf16[128,784], index: 0, kind: input, shape index: {}]
  %s1 = inlined_call_operand.vmem [shape: bf16[784,32], index: 1, kind: input, shape index: {}]
  %s2 = inlined_call_operand.vmem [shape: f32[1,32], index: 2, kind: input, shape index: {}]
  %s3 = inlined_call_operand.vmem [shape: bf16[32,32], index: 3, kind: input, shape index: {}]
  %s4 = inlined_call_operand.vmem [shape: f32[1,32], index: 4, kind: input, shape index: {}]
  %s5 = inlined_call_operand.vmem [shape: bf16[32,10], index: 5, kind: input, shape index: {}]
  %s6 = inlined_call_operand.vmem [shape: f32[1,10], index: 6, kind: input, shape index: {}]
  %s7 = inlined_call_operand.vmem [shape: f32[10,128], index: 7, kind: output, shape index: {}]
  %s8 = sld [smem:[#allocation0]]
  $region38: #{custom_mlp_forward.1} parent=0
    _
  %s10 = ssub.s32 1, %s8
  %s11 = scalar_select 0, %s10, %s8
  // Predicated region
  $region2: #{custom_mlp_forward.1} parent=0 // pred_check
    _
  $region3: #{custom_mlp_forward.1} parent=0 // pred_check_branch
    %13 = sbr.rel (0) target = $region5
  $region4: #{custom_mlp_forward.1} parent=0 // pred_region
    _
  $region5: #{custom_mlp_forward.1} parent=0 // pred_fallthru
    _
  // Predicated region
  $region6: #{custom_mlp_forward.1} parent=0 // pred_check
    _
  $region7: #{custom_mlp_forward.1} parent=0 // pred_check_branch
    %15 = sbr.rel (0) target = $region9
  $region8: #{custom_mlp_forward.1} parent=0 // pred_region
    _
  $region9: #{custom_mlp_forward.1} parent=0 // pred_fallthru
    _
  // Predicated region
  $region10: #{custom_mlp_forward.1} parent=0 // pred_check
    _
  $region11: #{custom_mlp_forward.1} parent=0 // pred_check_branch
    %17 = sbr.rel (0) target = $region13
  $region12: #{custom_mlp_forward.1} parent=0 // pred_region
    _
  $region13: #{custom_mlp_forward.1} parent=0 // pred_fallthru
    _
  // Predicated region
  $region14: #{custom_mlp_forward.1} parent=0 // pred_check
    _
  $region15: #{custom_mlp_forward.1} parent=0 // pred_check_branch
    %19 = sbr.rel (0) target = $region17
  $region16: #{custom_mlp_forward.1} parent=0 // pred_region
    _
  $region17: #{custom_mlp_forward.1} parent=0 // pred_fallthru
    _
  // Predicated region
  $region18: #{custom_mlp_forward.1} parent=0 // pred_check
    _
  $region19: #{custom_mlp_forward.1} parent=0 // pred_check_branch
    %21 = sbr.rel (0) target = $region21
  $region20: #{custom_mlp_forward.1} parent=0 // pred_region
    _
  $region21: #{custom_mlp_forward.1} parent=0 // pred_fallthru
    _
  // Predicated region
  $region22: #{custom_mlp_forward.1} parent=0 // pred_check
    _
  $region23: #{custom_mlp_forward.1} parent=0 // pred_check_branch
    %23 = sbr.rel (0) target = $region25
  $region24: #{custom_mlp_forward.1} parent=0 // pred_region
    _
  $region25: #{custom_mlp_forward.1} parent=0 // pred_fallthru
    _
  // Predicated region
  $region26: #{custom_mlp_forward.1} parent=0 // pred_check
    _
  $region27: #{custom_mlp_forward.1} parent=0 // pred_check_branch
    %25 = sbr.rel (0) target = $region29
  $region28: #{custom_mlp_forward.1} parent=0 // pred_region
    _
  $region29: #{custom_mlp_forward.1} parent=0 // pred_fallthru
    _
  %v27 = vld [vmem:[%s0] sm:$0xff]
  %v28 = vld [vmem:[%s0 + $0x8] sm:$0xff]
  %v29 = vld [vmem:[%s0 + $0x10] sm:$0xff]
  %v30 = vld [vmem:[%s0 + $0x18] sm:$0xf]
  %v31 = vld [vmem:[%s0 + $0x1c] sm:$0xff]
  %v32 = vld [vmem:[%s0 + $0x24] sm:$0xff]
  %v33 = vld [vmem:[%s0 + $0x2c] sm:$0xff]
  %v34 = vld [vmem:[%s0 + $0x34] sm:$0xf]
  %v35 = vld [vmem:[%s0 + $0x38] sm:$0xff]
  %v36 = vld [vmem:[%s0 + $0x40] sm:$0xff]
  %v37 = vld [vmem:[%s0 + $0x48] sm:$0xff]
  %v38 = vld [vmem:[%s0 + $0x50] sm:$0xf]
  %v39 = vld [vmem:[%s0 + $0x54] sm:$0xff]
  %v40 = vld [vmem:[%s0 + $0x5c] sm:$0xff]
  %v41 = vld [vmem:[%s0 + $0x64] sm:$0xff]
  %v42 = vld [vmem:[%s0 + $0x6c] sm:$0xf]
  %v43 = vld [vmem:[%s0 + $0x70] sm:$0xff]
  %v44 = vld [vmem:[%s0 + $0x78] sm:$0xff]
  %v45 = vld [vmem:[%s0 + $0x80] sm:$0xff]
  %v46 = vld [vmem:[%s0 + $0x88] sm:$0xf]
  %v47 = vld [vmem:[%s0 + $0x8c] sm:$0xff]
  %v48 = vld [vmem:[%s0 + $0x94] sm:$0xff]
  %v49 = vld [vmem:[%s0 + $0x9c] sm:$0xff]
  %v50 = vld [vmem:[%s0 + $0xa4] sm:$0xf]
  %v51 = vld [vmem:[%s0 + $0xa8] sm:$0xff]
  %v52 = vld [vmem:[%s0 + $0xb0] sm:$0xff]
  %v53 = vld [vmem:[%s0 + $0xb8] sm:$0xff]
  %v54 = vld [vmem:[%s0 + $0xc0] sm:$0xf]
  %v55 = vld [vmem:[%s0 + $0xc4] sm:$0xff]
  %v56 = vld [vmem:[%s0 + $0xcc] sm:$0xff]
  %v57 = vld [vmem:[%s0 + $0xd4] sm:$0xff]
  %v58 = vld [vmem:[%s0 + $0xdc] sm:$0xf]
  %v59 = vld [vmem:[%s0 + $0xe0] sm:$0xff]
  %v60 = vld [vmem:[%s0 + $0xe8] sm:$0xff]
  %v61 = vld [vmem:[%s0 + $0xf0] sm:$0xff]
  %v62 = vld [vmem:[%s0 + $0xf8] sm:$0xf]
  %v63 = vld [vmem:[%s0 + $0xfc] sm:$0xff]
  %v64 = vld [vmem:[%s0 + $0x104] sm:$0xff]
  %v65 = vld [vmem:[%s0 + $0x10c] sm:$0xff]
  %v66 = vld [vmem:[%s0 + $0x114] sm:$0xf]
  %v67 = vld [vmem:[%s0 + $0x118] sm:$0xff]
  %v68 = vld [vmem:[%s0 + $0x120] sm:$0xff]
  %v69 = vld [vmem:[%s0 + $0x128] sm:$0xff]
  %v70 = vld [vmem:[%s0 + $0x130] sm:$0xf]
  %v71 = vld [vmem:[%s0 + $0x134] sm:$0xff]
  %v72 = vld [vmem:[%s0 + $0x13c] sm:$0xff]
  %v73 = vld [vmem:[%s0 + $0x144] sm:$0xff]
  %v74 = vld [vmem:[%s0 + $0x14c] sm:$0xf]
  %v75 = vld [vmem:[%s0 + $0x150] sm:$0xff]
  %v76 = vld [vmem:[%s0 + $0x158] sm:$0xff]
  %v77 = vld [vmem:[%s0 + $0x160] sm:$0xff]
  %v78 = vld [vmem:[%s0 + $0x168] sm:$0xf]
  %v79 = vld [vmem:[%s0 + $0x16c] sm:$0xff]
  %v80 = vld [vmem:[%s0 + $0x174] sm:$0xff]
  %v81 = vld [vmem:[%s0 + $0x17c] sm:$0xff]
  %v82 = vld [vmem:[%s0 + $0x184] sm:$0xf]
  %v83 = vld [vmem:[%s0 + $0x188] sm:$0xff]
  %v84 = vld [vmem:[%s0 + $0x190] sm:$0xff]
  %v85 = vld [vmem:[%s0 + $0x198] sm:$0xff]
  %v86 = vld [vmem:[%s0 + $0x1a0] sm:$0xf]
  %v87 = vld [vmem:[%s0 + $0x1a4] sm:$0xff]
  %v88 = vld [vmem:[%s0 + $0x1ac] sm:$0xff]
  %v89 = vld [vmem:[%s0 + $0x1b4] sm:$0xff]
  %v90 = vld [vmem:[%s0 + $0x1bc] sm:$0xf]
  %v91 = vld [vmem:[%s1] sm:$0xf]
  %v92 = vld [vmem:[%s1 + $0x4] sm:$0xf]
  %v93 = vld [vmem:[%s1 + $0x8] sm:$0xf]
  %v94 = vld [vmem:[%s1 + $0xc] sm:$0xf]
  %v95 = vld [vmem:[%s1 + $0x10] sm:$0xf]
  %v96 = vld [vmem:[%s1 + $0x14] sm:$0xf]
  %v97 = vld [vmem:[%s1 + $0x18] sm:$0xf]
  %v98 = vld [vmem:[%s1 + $0x1c] sm:$0xf]
  %v99 = vld [vmem:[%s1 + $0x20] sm:$0xf]
  %v100 = vld [vmem:[%s1 + $0x24] sm:$0xf]
  %v101 = vld [vmem:[%s1 + $0x28] sm:$0xf]
  %v102 = vld [vmem:[%s1 + $0x2c] sm:$0xf]
  %v103 = vld [vmem:[%s1 + $0x30] sm:$0xf]
  %v104 = vld [vmem:[%s1 + $0x34] sm:$0xf]
  %v105 = vld [vmem:[%s1 + $0x38] sm:$0xf]
  %v106 = vld [vmem:[%s1 + $0x3c] sm:$0xf]
  %v107 = vld [vmem:[%s1 + $0x40] sm:$0xf]
  %v108 = vld [vmem:[%s1 + $0x44] sm:$0xf]
  %v109 = vld [vmem:[%s1 + $0x48] sm:$0xf]
  %v110 = vld [vmem:[%s1 + $0x4c] sm:$0xf]
  %v111 = vld [vmem:[%s1 + $0x50] sm:$0xf]
  %v112 = vld [vmem:[%s1 + $0x54] sm:$0xf]
  %v113 = vld [vmem:[%s1 + $0x58] sm:$0xf]
  %v114 = vld [vmem:[%s1 + $0x5c] sm:$0xf]
  %v115 = vld [vmem:[%s1 + $0x60] sm:$0xf]
  %v116 = vld [vmem:[%s1 + $0x64] sm:$0xf]
  %v117 = vld [vmem:[%s1 + $0x68] sm:$0xf]
  %v118 = vld [vmem:[%s1 + $0x6c] sm:$0xf]
  %v119 = vld [vmem:[%s1 + $0x70] sm:$0xf]
  %v120 = vld [vmem:[%s1 + $0x74] sm:$0xf]
  %v121 = vld [vmem:[%s1 + $0x78] sm:$0xf]
  %v122 = vld [vmem:[%s1 + $0x7c] sm:$0xf]
  %v123 = vld [vmem:[%s1 + $0x80] sm:$0xf]
  %v124 = vld [vmem:[%s1 + $0x84] sm:$0xf]
  %v125 = vld [vmem:[%s1 + $0x88] sm:$0xf]
  %v126 = vld [vmem:[%s1 + $0x8c] sm:$0xf]
  %v127 = vld [vmem:[%s1 + $0x90] sm:$0xf]
  %v128 = vld [vmem:[%s1 + $0x94] sm:$0xf]
  %v129 = vld [vmem:[%s1 + $0x98] sm:$0xf]
  %v130 = vld [vmem:[%s1 + $0x9c] sm:$0xf]
  %v131 = vld [vmem:[%s1 + $0xa0] sm:$0xf]
  %v132 = vld [vmem:[%s1 + $0xa4] sm:$0xf]
  %v133 = vld [vmem:[%s1 + $0xa8] sm:$0xf]
  %v134 = vld [vmem:[%s1 + $0xac] sm:$0xf]
  %v135 = vld [vmem:[%s1 + $0xb0] sm:$0xf]
  %v136 = vld [vmem:[%s1 + $0xb4] sm:$0xf]
  %v137 = vld [vmem:[%s1 + $0xb8] sm:$0xf]
  %v138 = vld [vmem:[%s1 + $0xbc] sm:$0xf]
  %v139 = vld [vmem:[%s1 + $0xc0] sm:$0xf]
  %v140 = vld [vmem:[%s1 + $0xc4] sm:$0xf]
  %v141 = vld [vmem:[%s1 + $0xc8] sm:$0xf]
  %v142 = vld [vmem:[%s1 + $0xcc] sm:$0xf]
  %v143 = vld [vmem:[%s1 + $0xd0] sm:$0xf]
  %v144 = vld [vmem:[%s1 + $0xd4] sm:$0xf]
  %v145 = vld [vmem:[%s1 + $0xd8] sm:$0xf]
  %v146 = vld [vmem:[%s1 + $0xdc] sm:$0xf]
  %v147 = vld [vmem:[%s1 + $0xe0] sm:$0xf]
  %v148 = vld [vmem:[%s1 + $0xe4] sm:$0xf]
  %v149 = vld [vmem:[%s1 + $0xe8] sm:$0xf]
  %v150 = vld [vmem:[%s1 + $0xec] sm:$0xf]
  %v151 = vld [vmem:[%s1 + $0xf0] sm:$0xf]
  %v152 = vld [vmem:[%s1 + $0xf4] sm:$0xf]
  %v153 = vld [vmem:[%s1 + $0xf8] sm:$0xf]
  %v154 = vld [vmem:[%s1 + $0xfc] sm:$0xf]
  %v155 = vld [vmem:[%s1 + $0x100] sm:$0xf]
  %v156 = vld [vmem:[%s1 + $0x104] sm:$0xf]
  %v157 = vld [vmem:[%s1 + $0x108] sm:$0xf]
  %v158 = vld [vmem:[%s1 + $0x10c] sm:$0xf]
  %v159 = vld [vmem:[%s1 + $0x110] sm:$0xf]
  %v160 = vld [vmem:[%s1 + $0x114] sm:$0xf]
  %v161 = vld [vmem:[%s1 + $0x118] sm:$0xf]
  %v162 = vld [vmem:[%s1 + $0x11c] sm:$0xf]
  %v163 = vld [vmem:[%s1 + $0x120] sm:$0xf]
  %v164 = vld [vmem:[%s1 + $0x124] sm:$0xf]
  %v165 = vld [vmem:[%s1 + $0x128] sm:$0xf]
  %v166 = vld [vmem:[%s1 + $0x12c] sm:$0xf]
  %v167 = vld [vmem:[%s1 + $0x130] sm:$0xf]
  %v168 = vld [vmem:[%s1 + $0x134] sm:$0xf]
  %v169 = vld [vmem:[%s1 + $0x138] sm:$0xf]
  %v170 = vld [vmem:[%s1 + $0x13c] sm:$0xf]
  %v171 = vld [vmem:[%s1 + $0x140] sm:$0xf]
  %v172 = vld [vmem:[%s1 + $0x144] sm:$0xf]
  %v173 = vld [vmem:[%s1 + $0x148] sm:$0xf]
  %v174 = vld [vmem:[%s1 + $0x14c] sm:$0xf]
  %v175 = vld [vmem:[%s1 + $0x150] sm:$0xf]
  %v176 = vld [vmem:[%s1 + $0x154] sm:$0xf]
  %v177 = vld [vmem:[%s1 + $0x158] sm:$0xf]
  %v178 = vld [vmem:[%s1 + $0x15c] sm:$0xf]
  %v179 = vld [vmem:[%s1 + $0x160] sm:$0xf]
  %v180 = vld [vmem:[%s1 + $0x164] sm:$0xf]
  %v181 = vld [vmem:[%s1 + $0x168] sm:$0xf]
  %v182 = vld [vmem:[%s1 + $0x16c] sm:$0xf]
  %v183 = vld [vmem:[%s1 + $0x170] sm:$0xf]
  %v184 = vld [vmem:[%s1 + $0x174] sm:$0xf]
  %v185 = vld [vmem:[%s1 + $0x178] sm:$0xf]
  %v186 = vld [vmem:[%s1 + $0x17c] sm:$0xf]
  %v187 = vld [vmem:[%s1 + $0x180] sm:$0xf]
  %v188 = vld [vmem:[%s1 + $0x184] sm:$0xf]
  %v189 = vld [vmem:[%s2] sm:$0x1]
  %v191 = vperm.slane %v189, 0
  %v257 = vunpack.c.l.b16 %v27
  %v258 = vunpack.c.h.b16 %v27
  %v259 = vunpack.c.l.b16 %v28
  %v260 = vunpack.c.h.b16 %v28
  %v261 = vunpack.c.l.b16 %v29
  %v262 = vunpack.c.h.b16 %v29
  %v263 = vunpack.c.l.b16 %v30
  %v264 = vunpack.c.l.b16 %v31
  %v265 = vunpack.c.h.b16 %v31
  %v266 = vunpack.c.l.b16 %v32
  %v267 = vunpack.c.h.b16 %v32
  %v268 = vunpack.c.l.b16 %v33
  %v269 = vunpack.c.h.b16 %v33
  %v270 = vunpack.c.l.b16 %v34
  %v271 = vunpack.c.l.b16 %v35
  %v272 = vunpack.c.h.b16 %v35
  %v273 = vunpack.c.l.b16 %v36
  %v274 = vunpack.c.h.b16 %v36
  %v275 = vunpack.c.l.b16 %v37
  %v276 = vunpack.c.h.b16 %v37
  %v277 = vunpack.c.l.b16 %v38
  %v278 = vunpack.c.l.b16 %v39
  %v279 = vunpack.c.h.b16 %v39
  %v280 = vunpack.c.l.b16 %v40
  %v281 = vunpack.c.h.b16 %v40
  %v282 = vunpack.c.l.b16 %v41
  %v283 = vunpack.c.h.b16 %v41
  %v284 = vunpack.c.l.b16 %v42
  %v285 = vunpack.c.l.b16 %v43
  %v286 = vunpack.c.h.b16 %v43
  %v287 = vunpack.c.l.b16 %v44
  %v288 = vunpack.c.h.b16 %v44
  %v289 = vunpack.c.l.b16 %v45
  %v290 = vunpack.c.h.b16 %v45
  %v291 = vunpack.c.l.b16 %v46
  %v292 = vunpack.c.l.b16 %v47
  %v293 = vunpack.c.h.b16 %v47
  %v294 = vunpack.c.l.b16 %v48
  %v295 = vunpack.c.h.b16 %v48
  %v296 = vunpack.c.l.b16 %v49
  %v297 = vunpack.c.h.b16 %v49
  %v298 = vunpack.c.l.b16 %v50
  %v299 = vunpack.c.l.b16 %v51
  %v300 = vunpack.c.h.b16 %v51
  %v301 = vunpack.c.l.b16 %v52
  %v302 = vunpack.c.h.b16 %v52
  %v303 = vunpack.c.l.b16 %v53
  %v304 = vunpack.c.h.b16 %v53
  %v305 = vunpack.c.l.b16 %v54
  %v306 = vunpack.c.l.b16 %v55
  %v307 = vunpack.c.h.b16 %v55
  %v308 = vunpack.c.l.b16 %v56
  %v309 = vunpack.c.h.b16 %v56
  %v310 = vunpack.c.l.b16 %v57
  %v311 = vunpack.c.h.b16 %v57
  %v312 = vunpack.c.l.b16 %v58
  %v313 = vunpack.c.l.b16 %v59
  %v314 = vunpack.c.h.b16 %v59
  %v315 = vunpack.c.l.b16 %v60
  %v316 = vunpack.c.h.b16 %v60
  %v317 = vunpack.c.l.b16 %v61
  %v318 = vunpack.c.h.b16 %v61
  %v319 = vunpack.c.l.b16 %v62
  %v320 = vunpack.c.l.b16 %v63
  %v321 = vunpack.c.h.b16 %v63
  %v322 = vunpack.c.l.b16 %v64
  %v323 = vunpack.c.h.b16 %v64
  %v324 = vunpack.c.l.b16 %v65
  %v325 = vunpack.c.h.b16 %v65
  %v326 = vunpack.c.l.b16 %v66
  %v327 = vunpack.c.l.b16 %v67
  %v328 = vunpack.c.h.b16 %v67
  %v329 = vunpack.c.l.b16 %v68
  %v330 = vunpack.c.h.b16 %v68
  %v331 = vunpack.c.l.b16 %v69
  %v332 = vunpack.c.h.b16 %v69
  %v333 = vunpack.c.l.b16 %v70
  %v334 = vunpack.c.l.b16 %v71
  %v335 = vunpack.c.h.b16 %v71
  %v336 = vunpack.c.l.b16 %v72
  %v337 = vunpack.c.h.b16 %v72
  %v338 = vunpack.c.l.b16 %v73
  %v339 = vunpack.c.h.b16 %v73
  %v340 = vunpack.c.l.b16 %v74
  %v341 = vunpack.c.l.b16 %v75
  %v342 = vunpack.c.h.b16 %v75
  %v343 = vunpack.c.l.b16 %v76
  %v344 = vunpack.c.h.b16 %v76
  %v345 = vunpack.c.l.b16 %v77
  %v346 = vunpack.c.h.b16 %v77
  %v347 = vunpack.c.l.b16 %v78
  %v348 = vunpack.c.l.b16 %v79
  %v349 = vunpack.c.h.b16 %v79
  %v350 = vunpack.c.l.b16 %v80
  %v351 = vunpack.c.h.b16 %v80
  %v352 = vunpack.c.l.b16 %v81
  %v353 = vunpack.c.h.b16 %v81
  %v354 = vunpack.c.l.b16 %v82
  %v355 = vunpack.c.l.b16 %v83
  %v356 = vunpack.c.h.b16 %v83
  %v357 = vunpack.c.l.b16 %v84
  %v358 = vunpack.c.h.b16 %v84
  %v359 = vunpack.c.l.b16 %v85
  %v360 = vunpack.c.h.b16 %v85
  %v361 = vunpack.c.l.b16 %v86
  %v362 = vunpack.c.l.b16 %v87
  %v363 = vunpack.c.h.b16 %v87
  %v364 = vunpack.c.l.b16 %v88
  %v365 = vunpack.c.h.b16 %v88
  %v366 = vunpack.c.l.b16 %v89
  %v367 = vunpack.c.h.b16 %v89
  %v368 = vunpack.c.l.b16 %v90
  %v369 = vpack.c.b16 %v264, %v257
  %v370 = vpack.c.b16 %v265, %v258
  %v371 = vpack.c.b16 %v266, %v259
  %v372 = vpack.c.b16 %v267, %v260
  %v373 = vpack.c.b16 %v268, %v261
  %v374 = vpack.c.b16 %v269, %v262
  %v375 = vpack.c.b16 %v270, %v263
  %v376 = vpack.c.b16 %v278, %v271
  %v377 = vpack.c.b16 %v279, %v272
  %v378 = vpack.c.b16 %v280, %v273
  %v379 = vpack.c.b16 %v281, %v274
  %v380 = vpack.c.b16 %v282, %v275
  %v381 = vpack.c.b16 %v283, %v276
  %v382 = vpack.c.b16 %v284, %v277
  %v383 = vpack.c.b16 %v292, %v285
  %v384 = vpack.c.b16 %v293, %v286
  %v385 = vpack.c.b16 %v294, %v287
  %v386 = vpack.c.b16 %v295, %v288
  %v387 = vpack.c.b16 %v296, %v289
  %v388 = vpack.c.b16 %v297, %v290
  %v389 = vpack.c.b16 %v298, %v291
  %v390 = vpack.c.b16 %v306, %v299
  %v391 = vpack.c.b16 %v307, %v300
  %v392 = vpack.c.b16 %v308, %v301
  %v393 = vpack.c.b16 %v309, %v302
  %v394 = vpack.c.b16 %v310, %v303
  %v395 = vpack.c.b16 %v311, %v304
  %v396 = vpack.c.b16 %v312, %v305
  %v397 = vpack.c.b16 %v320, %v313
  %v398 = vpack.c.b16 %v321, %v314
  %v399 = vpack.c.b16 %v322, %v315
  %v400 = vpack.c.b16 %v323, %v316
  %v401 = vpack.c.b16 %v324, %v317
  %v402 = vpack.c.b16 %v325, %v318
  %v403 = vpack.c.b16 %v326, %v319
  %v404 = vpack.c.b16 %v334, %v327
  %v405 = vpack.c.b16 %v335, %v328
  %v406 = vpack.c.b16 %v336, %v329
  %v407 = vpack.c.b16 %v337, %v330
  %v408 = vpack.c.b16 %v338, %v331
  %v409 = vpack.c.b16 %v339, %v332
  %v410 = vpack.c.b16 %v340, %v333
  %v411 = vpack.c.b16 %v348, %v341
  %v412 = vpack.c.b16 %v349, %v342
  %v413 = vpack.c.b16 %v350, %v343
  %v414 = vpack.c.b16 %v351, %v344
  %v415 = vpack.c.b16 %v352, %v345
  %v416 = vpack.c.b16 %v353, %v346
  %v417 = vpack.c.b16 %v354, %v347
  %v418 = vpack.c.b16 %v362, %v355
  %v419 = vpack.c.b16 %v363, %v356
  %v420 = vpack.c.b16 %v364, %v357
  %v421 = vpack.c.b16 %v365, %v358
  %v422 = vpack.c.b16 %v366, %v359
  %v423 = vpack.c.b16 %v367, %v360
  %v424 = vpack.c.b16 %v368, %v361
  %v571 = vunpack.c.l.b16 %v91
  %v572 = vunpack.c.l.b16 %v92
  %v573 = vunpack.c.l.b16 %v93
  %v574 = vunpack.c.l.b16 %v94
  %v575 = vunpack.c.l.b16 %v95
  %v576 = vunpack.c.l.b16 %v96
  %v577 = vunpack.c.l.b16 %v97
  %v578 = vunpack.c.l.b16 %v98
  %v579 = vunpack.c.l.b16 %v99
  %v580 = vunpack.c.l.b16 %v100
  %v581 = vunpack.c.l.b16 %v101
  %v582 = vunpack.c.l.b16 %v102
  %v583 = vunpack.c.l.b16 %v103
  %v584 = vunpack.c.l.b16 %v104
  %v585 = vunpack.c.l.b16 %v105
  %v586 = vunpack.c.l.b16 %v106
  %v587 = vunpack.c.l.b16 %v107
  %v588 = vunpack.c.l.b16 %v108
  %v589 = vunpack.c.l.b16 %v109
  %v590 = vunpack.c.l.b16 %v110
  %v591 = vunpack.c.l.b16 %v111
  %v592 = vunpack.c.l.b16 %v112
  %v593 = vunpack.c.l.b16 %v113
  %v594 = vunpack.c.l.b16 %v114
  %v595 = vunpack.c.l.b16 %v115
  %v596 = vunpack.c.l.b16 %v116
  %v597 = vunpack.c.l.b16 %v117
  %v598 = vunpack.c.l.b16 %v118
  %v599 = vunpack.c.l.b16 %v119
  %v600 = vunpack.c.l.b16 %v120
  %v601 = vunpack.c.l.b16 %v121
  %v602 = vunpack.c.l.b16 %v122
  %v603 = vunpack.c.l.b16 %v123
  %v604 = vunpack.c.l.b16 %v124
  %v605 = vunpack.c.l.b16 %v125
  %v606 = vunpack.c.l.b16 %v126
  %v607 = vunpack.c.l.b16 %v127
  %v608 = vunpack.c.l.b16 %v128
  %v609 = vunpack.c.l.b16 %v129
  %v610 = vunpack.c.l.b16 %v130
  %v611 = vunpack.c.l.b16 %v131
  %v612 = vunpack.c.l.b16 %v132
  %v613 = vunpack.c.l.b16 %v133
  %v614 = vunpack.c.l.b16 %v134
  %v615 = vunpack.c.l.b16 %v135
  %v616 = vunpack.c.l.b16 %v136
  %v617 = vunpack.c.l.b16 %v137
  %v618 = vunpack.c.l.b16 %v138
  %v619 = vunpack.c.l.b16 %v139
  %v620 = vunpack.c.l.b16 %v140
  %v621 = vunpack.c.l.b16 %v141
  %v622 = vunpack.c.l.b16 %v142
  %v623 = vunpack.c.l.b16 %v143
  %v624 = vunpack.c.l.b16 %v144
  %v625 = vunpack.c.l.b16 %v145
  %v626 = vunpack.c.l.b16 %v146
  %v627 = vunpack.c.l.b16 %v147
  %v628 = vunpack.c.l.b16 %v148
  %v629 = vunpack.c.l.b16 %v149
  %v630 = vunpack.c.l.b16 %v150
  %v631 = vunpack.c.l.b16 %v151
  %v632 = vunpack.c.l.b16 %v152
  %v633 = vunpack.c.l.b16 %v153
  %v634 = vunpack.c.l.b16 %v154
  %v635 = vunpack.c.l.b16 %v155
  %v636 = vunpack.c.l.b16 %v156
  %v637 = vunpack.c.l.b16 %v157
  %v638 = vunpack.c.l.b16 %v158
  %v639 = vunpack.c.l.b16 %v159
  %v640 = vunpack.c.l.b16 %v160
  %v641 = vunpack.c.l.b16 %v161
  %v642 = vunpack.c.l.b16 %v162
  %v643 = vunpack.c.l.b16 %v163
  %v644 = vunpack.c.l.b16 %v164
  %v645 = vunpack.c.l.b16 %v165
  %v646 = vunpack.c.l.b16 %v166
  %v647 = vunpack.c.l.b16 %v167
  %v648 = vunpack.c.l.b16 %v168
  %v649 = vunpack.c.l.b16 %v169
  %v650 = vunpack.c.l.b16 %v170
  %v651 = vunpack.c.l.b16 %v171
  %v652 = vunpack.c.l.b16 %v172
  %v653 = vunpack.c.l.b16 %v173
  %v654 = vunpack.c.l.b16 %v174
  %v655 = vunpack.c.l.b16 %v175
  %v656 = vunpack.c.l.b16 %v176
  %v657 = vunpack.c.l.b16 %v177
  %v658 = vunpack.c.l.b16 %v178
  %v659 = vunpack.c.l.b16 %v179
  %v660 = vunpack.c.l.b16 %v180
  %v661 = vunpack.c.l.b16 %v181
  %v662 = vunpack.c.l.b16 %v182
  %v663 = vunpack.c.l.b16 %v183
  %v664 = vunpack.c.l.b16 %v184
  %v665 = vunpack.c.l.b16 %v185
  %v666 = vunpack.c.l.b16 %v186
  %v667 = vunpack.c.l.b16 %v187
  %v668 = vunpack.c.l.b16 %v188
  %v669 = vpack.c.b16 %v572, %v571
  %v670 = vpack.c.b16 %v574, %v573
  %v671 = vpack.c.b16 %v576, %v575
  %v672 = vpack.c.b16 %v578, %v577
  %v673 = vpack.c.b16 %v580, %v579
  %v674 = vpack.c.b16 %v582, %v581
  %v675 = vpack.c.b16 %v584, %v583
  %v676 = vpack.c.b16 %v586, %v585
  %v677 = vpack.c.b16 %v588, %v587
  %v678 = vpack.c.b16 %v590, %v589
  %v679 = vpack.c.b16 %v592, %v591
  %v680 = vpack.c.b16 %v594, %v593
  %v681 = vpack.c.b16 %v596, %v595
  %v682 = vpack.c.b16 %v598, %v597
  %v683 = vpack.c.b16 %v600, %v599
  %v684 = vpack.c.b16 %v602, %v601
  %v685 = vpack.c.b16 %v604, %v603
  %v686 = vpack.c.b16 %v606, %v605
  %v687 = vpack.c.b16 %v608, %v607
  %v688 = vpack.c.b16 %v610, %v609
  %v689 = vpack.c.b16 %v612, %v611
  %v690 = vpack.c.b16 %v614, %v613
  %v691 = vpack.c.b16 %v616, %v615
  %v692 = vpack.c.b16 %v618, %v617
  %v693 = vpack.c.b16 %v620, %v619
  %v694 = vpack.c.b16 %v622, %v621
  %v695 = vpack.c.b16 %v624, %v623
  %v696 = vpack.c.b16 %v626, %v625
  %v697 = vpack.c.b16 %v628, %v627
  %v698 = vpack.c.b16 %v630, %v629
  %v699 = vpack.c.b16 %v632, %v631
  %v700 = vpack.c.b16 %v634, %v633
  %v701 = vpack.c.b16 %v636, %v635
  %v702 = vpack.c.b16 %v638, %v637
  %v703 = vpack.c.b16 %v640, %v639
  %v704 = vpack.c.b16 %v642, %v641
  %v705 = vpack.c.b16 %v644, %v643
  %v706 = vpack.c.b16 %v646, %v645
  %v707 = vpack.c.b16 %v648, %v647
  %v708 = vpack.c.b16 %v650, %v649
  %v709 = vpack.c.b16 %v652, %v651
  %v710 = vpack.c.b16 %v654, %v653
  %v711 = vpack.c.b16 %v656, %v655
  %v712 = vpack.c.b16 %v658, %v657
  %v713 = vpack.c.b16 %v660, %v659
  %v714 = vpack.c.b16 %v662, %v661
  %v715 = vpack.c.b16 %v664, %v663
  %v716 = vpack.c.b16 %v666, %v665
  %v717 = vpack.c.b16 %v668, %v667
  %vm767 = vcmask 130048
  %v769 = vsel %vm767, %v375, 0
  %v772 = vsel %vm767, %v382, 0
  %v775 = vsel %vm767, %v389, 0
  %v778 = vsel %vm767, %v396, 0
  %v781 = vsel %vm767, %v403, 0
  %v784 = vsel %vm767, %v410, 0
  %v787 = vsel %vm767, %v417, 0
  %v790 = vsel %vm767, %v424, 0
  %792 = vmatpush.bf16.msra.mxu0 %v676
  %793 = vmatpush.bf16.msra.mxu0 %v675
  %794 = vmatpush.bf16.msra.mxu0 %v674
  %795 = vmatpush.bf16.msra.mxu0 %v673
  %796 = vmatpush.bf16.msra.mxu0 %v672
  %797 = vmatpush.bf16.msra.mxu0 %v671
  %798 = vmatpush.bf16.msra.mxu0 %v670
  %799 = vmatpush.bf16.msra.mxu0 %v669
  %800 = vmatmul.bf16.gmra.mxu0 %v369
  %v801 = vpop.f32.mrf.mxu0
  %v802 = vadd.f32 %v191, %v801
  %v803 = vpop.f32.mrf.mxu0
  %v804 = vadd.f32 %v191, %v803
  %805 = vmatmul.bf16.gmra.mxu0 %v376
  %v806 = vpop.f32.mrf.mxu0
  %v807 = vadd.f32 %v191, %v806
  %v808 = vpop.f32.mrf.mxu0
  %v809 = vadd.f32 %v191, %v808
  %810 = vmatmul.bf16.gmra.mxu0 %v383
  %v811 = vpop.f32.mrf.mxu0
  %v812 = vadd.f32 %v191, %v811
  %v813 = vpop.f32.mrf.mxu0
  %v814 = vadd.f32 %v191, %v813
  %815 = vmatmul.bf16.gmra.mxu0 %v390
  %v816 = vpop.f32.mrf.mxu0
  %v817 = vadd.f32 %v191, %v816
  %v818 = vpop.f32.mrf.mxu0
  %v819 = vadd.f32 %v191, %v818
  %820 = vmatmul.bf16.gmra.mxu0 %v397
  %v821 = vpop.f32.mrf.mxu0
  %v822 = vadd.f32 %v191, %v821
  %v823 = vpop.f32.mrf.mxu0
  %v824 = vadd.f32 %v191, %v823
  %825 = vmatmul.bf16.gmra.mxu0 %v404
  %v826 = vpop.f32.mrf.mxu0
  %v827 = vadd.f32 %v191, %v826
  %v828 = vpop.f32.mrf.mxu0
  %v829 = vadd.f32 %v191, %v828
  %830 = vmatmul.bf16.gmra.mxu0 %v411
  %v831 = vpop.f32.mrf.mxu0
  %v832 = vadd.f32 %v191, %v831
  %v833 = vpop.f32.mrf.mxu0
  %v834 = vadd.f32 %v191, %v833
  %835 = vmatmul.bf16.gmra.mxu0 %v418
  %v836 = vpop.f32.mrf.mxu0
  %v837 = vadd.f32 %v191, %v836
  %v838 = vpop.f32.mrf.mxu0
  %v839 = vadd.f32 %v191, %v838
  %840 = vdwg.mxu0
  %841 = vmatpush.bf16.msra.mxu0 %v684
  %842 = vmatpush.bf16.msra.mxu0 %v683
  %843 = vmatpush.bf16.msra.mxu0 %v682
  %844 = vmatpush.bf16.msra.mxu0 %v681
  %845 = vmatpush.bf16.msra.mxu0 %v680
  %846 = vmatpush.bf16.msra.mxu0 %v679
  %847 = vmatpush.bf16.msra.mxu0 %v678
  %848 = vmatpush.bf16.msra.mxu0 %v677
  %849 = vmatmul.bf16.gmra.mxu0 %v370
  %v850 = vpop.f32.mrf.mxu0
  %v851 = vadd.f32 %v802, %v850
  %v852 = vpop.f32.mrf.mxu0
  %v853 = vadd.f32 %v804, %v852
  %854 = vmatmul.bf16.gmra.mxu0 %v377
  %v855 = vpop.f32.mrf.mxu0
  %v856 = vadd.f32 %v807, %v855
  %v857 = vpop.f32.mrf.mxu0
  %v858 = vadd.f32 %v809, %v857
  %859 = vmatmul.bf16.gmra.mxu0 %v384
  %v860 = vpop.f32.mrf.mxu0
  %v861 = vadd.f32 %v812, %v860
  %v862 = vpop.f32.mrf.mxu0
  %v863 = vadd.f32 %v814, %v862
  %864 = vmatmul.bf16.gmra.mxu0 %v391
  %v865 = vpop.f32.mrf.mxu0
  %v866 = vadd.f32 %v817, %v865
  %v867 = vpop.f32.mrf.mxu0
  %v868 = vadd.f32 %v819, %v867
  %869 = vmatmul.bf16.gmra.mxu0 %v398
  %v870 = vpop.f32.mrf.mxu0
  %v871 = vadd.f32 %v822, %v870
  %v872 = vpop.f32.mrf.mxu0
  %v873 = vadd.f32 %v824, %v872
  %874 = vmatmul.bf16.gmra.mxu0 %v405
  %v875 = vpop.f32.mrf.mxu0
  %v876 = vadd.f32 %v827, %v875
  %v877 = vpop.f32.mrf.mxu0
  %v878 = vadd.f32 %v829, %v877
  %879 = vmatmul.bf16.gmra.mxu0 %v412
  %v880 = vpop.f32.mrf.mxu0
  %v881 = vadd.f32 %v832, %v880
  %v882 = vpop.f32.mrf.mxu0
  %v883 = vadd.f32 %v834, %v882
  %884 = vmatmul.bf16.gmra.mxu0 %v419
  %v885 = vpop.f32.mrf.mxu0
  %v886 = vadd.f32 %v837, %v885
  %v887 = vpop.f32.mrf.mxu0
  %v888 = vadd.f32 %v839, %v887
  %889 = vdwg.mxu0
  %890 = vmatpush.bf16.msra.mxu0 %v692
  %891 = vmatpush.bf16.msra.mxu0 %v691
  %892 = vmatpush.bf16.msra.mxu0 %v690
  %893 = vmatpush.bf16.msra.mxu0 %v689
  %894 = vmatpush.bf16.msra.mxu0 %v688
  %895 = vmatpush.bf16.msra.mxu0 %v687
  %896 = vmatpush.bf16.msra.mxu0 %v686
  %897 = vmatpush.bf16.msra.mxu0 %v685
  %898 = vmatmul.bf16.gmra.mxu0 %v371
  %v899 = vpop.f32.mrf.mxu0
  %v900 = vadd.f32 %v851, %v899
  %v901 = vpop.f32.mrf.mxu0
  %v902 = vadd.f32 %v853, %v901
  %903 = vmatmul.bf16.gmra.mxu0 %v378
  %v904 = vpop.f32.mrf.mxu0
  %v905 = vadd.f32 %v856, %v904
  %v906 = vpop.f32.mrf.mxu0
  %v907 = vadd.f32 %v858, %v906
  %908 = vmatmul.bf16.gmra.mxu0 %v385
  %v909 = vpop.f32.mrf.mxu0
  %v910 = vadd.f32 %v861, %v909
  %v911 = vpop.f32.mrf.mxu0
  %v912 = vadd.f32 %v863, %v911
  %913 = vmatmul.bf16.gmra.mxu0 %v392
  %v914 = vpop.f32.mrf.mxu0
  %v915 = vadd.f32 %v866, %v914
  %v916 = vpop.f32.mrf.mxu0
  %v917 = vadd.f32 %v868, %v916
  %918 = vmatmul.bf16.gmra.mxu0 %v399
  %v919 = vpop.f32.mrf.mxu0
  %v920 = vadd.f32 %v871, %v919
  %v921 = vpop.f32.mrf.mxu0
  %v922 = vadd.f32 %v873, %v921
  %923 = vmatmul.bf16.gmra.mxu0 %v406
  %v924 = vpop.f32.mrf.mxu0
  %v925 = vadd.f32 %v876, %v924
  %v926 = vpop.f32.mrf.mxu0
  %v927 = vadd.f32 %v878, %v926
  %928 = vmatmul.bf16.gmra.mxu0 %v413
  %v929 = vpop.f32.mrf.mxu0
  %v930 = vadd.f32 %v881, %v929
  %v931 = vpop.f32.mrf.mxu0
  %v932 = vadd.f32 %v883, %v931
  %933 = vmatmul.bf16.gmra.mxu0 %v420
  %v934 = vpop.f32.mrf.mxu0
  %v935 = vadd.f32 %v886, %v934
  %v936 = vpop.f32.mrf.mxu0
  %v937 = vadd.f32 %v888, %v936
  %938 = vdwg.mxu0
  %939 = vmatpush.bf16.msra.mxu0 %v700
  %940 = vmatpush.bf16.msra.mxu0 %v699
  %941 = vmatpush.bf16.msra.mxu0 %v698
  %942 = vmatpush.bf16.msra.mxu0 %v697
  %943 = vmatpush.bf16.msra.mxu0 %v696
  %944 = vmatpush.bf16.msra.mxu0 %v695
  %945 = vmatpush.bf16.msra.mxu0 %v694
  %946 = vmatpush.bf16.msra.mxu0 %v693
  %947 = vmatmul.bf16.gmra.mxu0 %v372
  %v948 = vpop.f32.mrf.mxu0
  %v949 = vadd.f32 %v900, %v948
  %v950 = vpop.f32.mrf.mxu0
  %v951 = vadd.f32 %v902, %v950
  %952 = vmatmul.bf16.gmra.mxu0 %v379
  %v953 = vpop.f32.mrf.mxu0
  %v954 = vadd.f32 %v905, %v953
  %v955 = vpop.f32.mrf.mxu0
  %v956 = vadd.f32 %v907, %v955
  %957 = vmatmul.bf16.gmra.mxu0 %v386
  %v958 = vpop.f32.mrf.mxu0
  %v959 = vadd.f32 %v910, %v958
  %v960 = vpop.f32.mrf.mxu0
  %v961 = vadd.f32 %v912, %v960
  %962 = vmatmul.bf16.gmra.mxu0 %v393
  %v963 = vpop.f32.mrf.mxu0
  %v964 = vadd.f32 %v915, %v963
  %v965 = vpop.f32.mrf.mxu0
  %v966 = vadd.f32 %v917, %v965
  %967 = vmatmul.bf16.gmra.mxu0 %v400
  %v968 = vpop.f32.mrf.mxu0
  %v969 = vadd.f32 %v920, %v968
  %v970 = vpop.f32.mrf.mxu0
  %v971 = vadd.f32 %v922, %v970
  %972 = vmatmul.bf16.gmra.mxu0 %v407
  %v973 = vpop.f32.mrf.mxu0
  %v974 = vadd.f32 %v925, %v973
  %v975 = vpop.f32.mrf.mxu0
  %v976 = vadd.f32 %v927, %v975
  %977 = vmatmul.bf16.gmra.mxu0 %v414
  %v978 = vpop.f32.mrf.mxu0
  %v979 = vadd.f32 %v930, %v978
  %v980 = vpop.f32.mrf.mxu0
  %v981 = vadd.f32 %v932, %v980
  %982 = vmatmul.bf16.gmra.mxu0 %v421
  %v983 = vpop.f32.mrf.mxu0
  %v984 = vadd.f32 %v935, %v983
  %v985 = vpop.f32.mrf.mxu0
  %v986 = vadd.f32 %v937, %v985
  %987 = vdwg.mxu0
  %988 = vmatpush.bf16.msra.mxu0 %v708
  %989 = vmatpush.bf16.msra.mxu0 %v707
  %990 = vmatpush.bf16.msra.mxu0 %v706
  %991 = vmatpush.bf16.msra.mxu0 %v705
  %992 = vmatpush.bf16.msra.mxu0 %v704
  %993 = vmatpush.bf16.msra.mxu0 %v703
  %994 = vmatpush.bf16.msra.mxu0 %v702
  %995 = vmatpush.bf16.msra.mxu0 %v701
  %996 = vmatmul.bf16.gmra.mxu0 %v373
  %v997 = vpop.f32.mrf.mxu0
  %v998 = vadd.f32 %v949, %v997
  %v999 = vpop.f32.mrf.mxu0
  %v1000 = vadd.f32 %v951, %v999
  %1001 = vmatmul.bf16.gmra.mxu0 %v380
  %v1002 = vpop.f32.mrf.mxu0
  %v1003 = vadd.f32 %v954, %v1002
  %v1004 = vpop.f32.mrf.mxu0
  %v1005 = vadd.f32 %v956, %v1004
  %1006 = vmatmul.bf16.gmra.mxu0 %v387
  %v1007 = vpop.f32.mrf.mxu0
  %v1008 = vadd.f32 %v959, %v1007
  %v1009 = vpop.f32.mrf.mxu0
  %v1010 = vadd.f32 %v961, %v1009
  %1011 = vmatmul.bf16.gmra.mxu0 %v394
  %v1012 = vpop.f32.mrf.mxu0
  %v1013 = vadd.f32 %v964, %v1012
  %v1014 = vpop.f32.mrf.mxu0
  %v1015 = vadd.f32 %v966, %v1014
  %1016 = vmatmul.bf16.gmra.mxu0 %v401
  %v1017 = vpop.f32.mrf.mxu0
  %v1018 = vadd.f32 %v969, %v1017
  %v1019 = vpop.f32.mrf.mxu0
  %v1020 = vadd.f32 %v971, %v1019
  %1021 = vmatmul.bf16.gmra.mxu0 %v408
  %v1022 = vpop.f32.mrf.mxu0
  %v1023 = vadd.f32 %v974, %v1022
  %v1024 = vpop.f32.mrf.mxu0
  %v1025 = vadd.f32 %v976, %v1024
  %1026 = vmatmul.bf16.gmra.mxu0 %v415
  %v1027 = vpop.f32.mrf.mxu0
  %v1028 = vadd.f32 %v979, %v1027
  %v1029 = vpop.f32.mrf.mxu0
  %v1030 = vadd.f32 %v981, %v1029
  %1031 = vmatmul.bf16.gmra.mxu0 %v422
  %v1032 = vpop.f32.mrf.mxu0
  %v1033 = vadd.f32 %v984, %v1032
  %v1034 = vpop.f32.mrf.mxu0
  %v1035 = vadd.f32 %v986, %v1034
  %1036 = vdwg.mxu0
  %1037 = vmatpush.bf16.msra.mxu0 %v716
  %1038 = vmatpush.bf16.msra.mxu0 %v715
  %1039 = vmatpush.bf16.msra.mxu0 %v714
  %1040 = vmatpush.bf16.msra.mxu0 %v713
  %1041 = vmatpush.bf16.msra.mxu0 %v712
  %1042 = vmatpush.bf16.msra.mxu0 %v711
  %1043 = vmatpush.bf16.msra.mxu0 %v710
  %1044 = vmatpush.bf16.msra.mxu0 %v709
  %1045 = vmatmul.bf16.gmra.mxu0 %v374
  %v1046 = vpop.f32.mrf.mxu0
  %v1047 = vadd.f32 %v998, %v1046
  %v1048 = vpop.f32.mrf.mxu0
  %v1049 = vadd.f32 %v1000, %v1048
  %1050 = vmatmul.bf16.gmra.mxu0 %v381
  %v1051 = vpop.f32.mrf.mxu0
  %v1052 = vadd.f32 %v1003, %v1051
  %v1053 = vpop.f32.mrf.mxu0
  %v1054 = vadd.f32 %v1005, %v1053
  %1055 = vmatmul.bf16.gmra.mxu0 %v388
  %v1056 = vpop.f32.mrf.mxu0
  %v1057 = vadd.f32 %v1008, %v1056
  %v1058 = vpop.f32.mrf.mxu0
  %v1059 = vadd.f32 %v1010, %v1058
  %1060 = vmatmul.bf16.gmra.mxu0 %v395
  %v1061 = vpop.f32.mrf.mxu0
  %v1062 = vadd.f32 %v1013, %v1061
  %v1063 = vpop.f32.mrf.mxu0
  %v1064 = vadd.f32 %v1015, %v1063
  %1065 = vmatmul.bf16.gmra.mxu0 %v402
  %v1066 = vpop.f32.mrf.mxu0
  %v1067 = vadd.f32 %v1018, %v1066
  %v1068 = vpop.f32.mrf.mxu0
  %v1069 = vadd.f32 %v1020, %v1068
  %1070 = vmatmul.bf16.gmra.mxu0 %v409
  %v1071 = vpop.f32.mrf.mxu0
  %v1072 = vadd.f32 %v1023, %v1071
  %v1073 = vpop.f32.mrf.mxu0
  %v1074 = vadd.f32 %v1025, %v1073
  %1075 = vmatmul.bf16.gmra.mxu0 %v416
  %v1076 = vpop.f32.mrf.mxu0
  %v1077 = vadd.f32 %v1028, %v1076
  %v1078 = vpop.f32.mrf.mxu0
  %v1079 = vadd.f32 %v1030, %v1078
  %1080 = vmatmul.bf16.gmra.mxu0 %v423
  %v1081 = vpop.f32.mrf.mxu0
  %v1082 = vadd.f32 %v1033, %v1081
  %v1083 = vpop.f32.mrf.mxu0
  %v1084 = vadd.f32 %v1035, %v1083
  %1085 = vdwg.mxu0
  %1086 = vmatpush.bf16.msra.mxu0 0
  %1087 = vmatpush.bf16.msra.mxu0 0
  %1088 = vmatpush.bf16.msra.mxu0 0
  %1089 = vmatpush.bf16.msra.mxu0 0
  %1090 = vmatpush.bf16.msra.mxu0 0
  %1091 = vmatpush.bf16.msra.mxu0 0
  %1092 = vmatpush.bf16.msra.mxu0 0
  %1093 = vmatpush.bf16.msra.mxu0 %v717
  %1094 = vmatmul.bf16.gmra.mxu0 %v769
  %v1095 = vpop.f32.mrf.mxu0
  %v1096 = vadd.f32 %v1047, %v1095
  %v1097 = vpop.f32.mrf.mxu0
  %v1098 = vadd.f32 %v1049, %v1097
  %1099 = vmatmul.bf16.gmra.mxu0 %v772
  %v1100 = vpop.f32.mrf.mxu0
  %v1101 = vadd.f32 %v1052, %v1100
  %v1102 = vpop.f32.mrf.mxu0
  %v1103 = vadd.f32 %v1054, %v1102
  %1104 = vmatmul.bf16.gmra.mxu0 %v775
  %v1105 = vpop.f32.mrf.mxu0
  %v1106 = vadd.f32 %v1057, %v1105
  %v1107 = vpop.f32.mrf.mxu0
  %v1108 = vadd.f32 %v1059, %v1107
  %1109 = vmatmul.bf16.gmra.mxu0 %v778
  %v1110 = vpop.f32.mrf.mxu0
  %v1111 = vadd.f32 %v1062, %v1110
  %v1112 = vpop.f32.mrf.mxu0
  %v1113 = vadd.f32 %v1064, %v1112
  %1114 = vmatmul.bf16.gmra.mxu0 %v781
  %v1115 = vpop.f32.mrf.mxu0
  %v1116 = vadd.f32 %v1067, %v1115
  %v1117 = vpop.f32.mrf.mxu0
  %v1118 = vadd.f32 %v1069, %v1117
  %1119 = vmatmul.bf16.gmra.mxu0 %v784
  %v1120 = vpop.f32.mrf.mxu0
  %v1121 = vadd.f32 %v1072, %v1120
  %v1122 = vpop.f32.mrf.mxu0
  %v1123 = vadd.f32 %v1074, %v1122
  %1124 = vmatmul.bf16.gmra.mxu0 %v787
  %v1125 = vpop.f32.mrf.mxu0
  %v1126 = vadd.f32 %v1077, %v1125
  %v1127 = vpop.f32.mrf.mxu0
  %v1128 = vadd.f32 %v1079, %v1127
  %1129 = vmatmul.bf16.gmra.mxu0 %v790
  %v1130 = vpop.f32.mrf.mxu0
  %v1131 = vadd.f32 %v1082, %v1130
  %v1132 = vpop.f32.mrf.mxu0
  %v1133 = vadd.f32 %v1084, %v1132
  %1134 = vdwg.mxu0
  %v1135 = vmax.f32 %v1096, 0.0
  %v1136 = vmax.f32 %v1098, 0.0
  %v1137 = vmax.f32 %v1101, 0.0
  %v1138 = vmax.f32 %v1103, 0.0
  %v1139 = vmax.f32 %v1106, 0.0
  %v1140 = vmax.f32 %v1108, 0.0
  %v1141 = vmax.f32 %v1111, 0.0
  %v1142 = vmax.f32 %v1113, 0.0
  %v1143 = vmax.f32 %v1116, 0.0
  %v1144 = vmax.f32 %v1118, 0.0
  %v1145 = vmax.f32 %v1121, 0.0
  %v1146 = vmax.f32 %v1123, 0.0
  %v1147 = vmax.f32 %v1126, 0.0
  %v1148 = vmax.f32 %v1128, 0.0
  %v1149 = vmax.f32 %v1131, 0.0
  %v1150 = vmax.f32 %v1133, 0.0
  %v1151 = vpack.c.bf16 %v1136, %v1135
  %v1152 = vpack.c.bf16 %v1138, %v1137
  %v1153 = vpack.c.bf16 %v1140, %v1139
  %v1154 = vpack.c.bf16 %v1142, %v1141
  %v1155 = vpack.c.bf16 %v1144, %v1143
  %v1156 = vpack.c.bf16 %v1146, %v1145
  %v1157 = vpack.c.bf16 %v1148, %v1147
  %v1158 = vpack.c.bf16 %v1150, %v1149
  %v1159 = vld [vmem:[%s3] sm:$0xf]
  %v1160 = vld [vmem:[%s3 + $0x4] sm:$0xf]
  %v1161 = vld [vmem:[%s3 + $0x8] sm:$0xf]
  %v1162 = vld [vmem:[%s3 + $0xc] sm:$0xf]
  %v1163 = vld [vmem:[%s4] sm:$0x1]
  %v1165 = vperm.slane %v1163, 0
  %v1171 = vunpack.c.l.b16 %v1159
  %v1172 = vunpack.c.l.b16 %v1160
  %v1173 = vunpack.c.l.b16 %v1161
  %v1174 = vunpack.c.l.b16 %v1162
  %v1175 = vpack.c.b16 %v1172, %v1171
  %v1176 = vpack.c.b16 %v1174, %v1173
  %vm1179 = vcmask 261120
  %v1181 = vsel %vm1179, %v1151, 0
  %v1184 = vsel %vm1179, %v1152, 0
  %v1187 = vsel %vm1179, %v1153, 0
  %v1190 = vsel %vm1179, %v1154, 0
  %v1193 = vsel %vm1179, %v1155, 0
  %v1196 = vsel %vm1179, %v1156, 0
  %v1199 = vsel %vm1179, %v1157, 0
  %v1202 = vsel %vm1179, %v1158, 0
  %1204 = vmatpush.bf16.msra.mxu0 0
  %1205 = vmatpush.bf16.msra.mxu0 0
  %1206 = vmatpush.bf16.msra.mxu0 0
  %1207 = vmatpush.bf16.msra.mxu0 0
  %1208 = vmatpush.bf16.msra.mxu0 0
  %1209 = vmatpush.bf16.msra.mxu0 0
  %1210 = vmatpush.bf16.msra.mxu0 %v1176
  %1211 = vmatpush.bf16.msra.mxu0 %v1175
  %1212 = vmatmul.bf16.gmra.mxu0 %v1181
  %v1213 = vpop.f32.mrf.mxu0
  %v1214 = vadd.f32 %v1165, %v1213
  %v1215 = vpop.f32.mrf.mxu0
  %v1216 = vadd.f32 %v1165, %v1215
  %1217 = vmatmul.bf16.gmra.mxu0 %v1184
  %v1218 = vpop.f32.mrf.mxu0
  %v1219 = vadd.f32 %v1165, %v1218
  %v1220 = vpop.f32.mrf.mxu0
  %v1221 = vadd.f32 %v1165, %v1220
  %1222 = vmatmul.bf16.gmra.mxu0 %v1187
  %v1223 = vpop.f32.mrf.mxu0
  %v1224 = vadd.f32 %v1165, %v1223
  %v1225 = vpop.f32.mrf.mxu0
  %v1226 = vadd.f32 %v1165, %v1225
  %1227 = vmatmul.bf16.gmra.mxu0 %v1190
  %v1228 = vpop.f32.mrf.mxu0
  %v1229 = vadd.f32 %v1165, %v1228
  %v1230 = vpop.f32.mrf.mxu0
  %v1231 = vadd.f32 %v1165, %v1230
  %1232 = vmatmul.bf16.gmra.mxu0 %v1193
  %v1233 = vpop.f32.mrf.mxu0
  %v1234 = vadd.f32 %v1165, %v1233
  %v1235 = vpop.f32.mrf.mxu0
  %v1236 = vadd.f32 %v1165, %v1235
  %1237 = vmatmul.bf16.gmra.mxu0 %v1196
  %v1238 = vpop.f32.mrf.mxu0
  %v1239 = vadd.f32 %v1165, %v1238
  %v1240 = vpop.f32.mrf.mxu0
  %v1241 = vadd.f32 %v1165, %v1240
  %1242 = vmatmul.bf16.gmra.mxu0 %v1199
  %v1243 = vpop.f32.mrf.mxu0
  %v1244 = vadd.f32 %v1165, %v1243
  %v1245 = vpop.f32.mrf.mxu0
  %v1246 = vadd.f32 %v1165, %v1245
  %1247 = vmatmul.bf16.gmra.mxu0 %v1202
  %v1248 = vpop.f32.mrf.mxu0
  %v1249 = vadd.f32 %v1165, %v1248
  %v1250 = vpop.f32.mrf.mxu0
  %v1251 = vadd.f32 %v1165, %v1250
  %1252 = vdwg.mxu0
  %v1253 = vmax.f32 %v1214, 0.0
  %v1254 = vmax.f32 %v1216, 0.0
  %v1255 = vmax.f32 %v1219, 0.0
  %v1256 = vmax.f32 %v1221, 0.0
  %v1257 = vmax.f32 %v1224, 0.0
  %v1258 = vmax.f32 %v1226, 0.0
  %v1259 = vmax.f32 %v1229, 0.0
  %v1260 = vmax.f32 %v1231, 0.0
  %v1261 = vmax.f32 %v1234, 0.0
  %v1262 = vmax.f32 %v1236, 0.0
  %v1263 = vmax.f32 %v1239, 0.0
  %v1264 = vmax.f32 %v1241, 0.0
  %v1265 = vmax.f32 %v1244, 0.0
  %v1266 = vmax.f32 %v1246, 0.0
  %v1267 = vmax.f32 %v1249, 0.0
  %v1268 = vmax.f32 %v1251, 0.0
  %v1269 = vpack.c.bf16 %v1254, %v1253
  %v1270 = vpack.c.bf16 %v1256, %v1255
  %v1271 = vpack.c.bf16 %v1258, %v1257
  %v1272 = vpack.c.bf16 %v1260, %v1259
  %v1273 = vpack.c.bf16 %v1262, %v1261
  %v1274 = vpack.c.bf16 %v1264, %v1263
  %v1275 = vpack.c.bf16 %v1266, %v1265
  %v1276 = vpack.c.bf16 %v1268, %v1267
  %v1277 = vld [vmem:[%s5] sm:$0xf]
  %v1278 = vld [vmem:[%s5 + $0x4] sm:$0xf]
  %v1279 = vld [vmem:[%s5 + $0x8] sm:$0xf]
  %v1280 = vld [vmem:[%s5 + $0xc] sm:$0xf]
  %v1281 = vld [vmem:[%s6] sm:$0x1]
  %v1283 = vperm.slane %v1281, 0
  %v1289 = vunpack.c.l.b16 %v1277
  %v1290 = vunpack.c.l.b16 %v1278
  %v1291 = vunpack.c.l.b16 %v1279
  %v1292 = vunpack.c.l.b16 %v1280
  %v1293 = vpack.c.b16 %v1290, %v1289
  %v1294 = vpack.c.b16 %v1292, %v1291
  %v1298 = vsel %vm1179, %v1269, 0
  %v1301 = vsel %vm1179, %v1270, 0
  %v1304 = vsel %vm1179, %v1271, 0
  %v1307 = vsel %vm1179, %v1272, 0
  %v1310 = vsel %vm1179, %v1273, 0
  %v1313 = vsel %vm1179, %v1274, 0
  %v1316 = vsel %vm1179, %v1275, 0
  %v1319 = vsel %vm1179, %v1276, 0
  %1321 = vmatpush.bf16.msra.mxu0 0
  %1322 = vmatpush.bf16.msra.mxu0 0
  %1323 = vmatpush.bf16.msra.mxu0 0
  %1324 = vmatpush.bf16.msra.mxu0 0
  %1325 = vmatpush.bf16.msra.mxu0 0
  %1326 = vmatpush.bf16.msra.mxu0 0
  %1327 = vmatpush.bf16.msra.mxu0 %v1294
  %1328 = vmatpush.bf16.msra.mxu0 %v1293
  %1329 = vmatmul.bf16.gmra.mxu0 %v1298
  %v1330 = vpop.f32.mrf.mxu0
  %v1331 = vadd.f32 %v1283, %v1330
  %v1332 = vpop.f32.mrf.mxu0
  %v1333 = vadd.f32 %v1283, %v1332
  %1334 = vmatmul.bf16.gmra.mxu0 %v1301
  %v1335 = vpop.f32.mrf.mxu0
  %v1336 = vadd.f32 %v1283, %v1335
  %v1337 = vpop.f32.mrf.mxu0
  %v1338 = vadd.f32 %v1283, %v1337
  %1339 = vmatmul.bf16.gmra.mxu0 %v1304
  %v1340 = vpop.f32.mrf.mxu0
  %v1341 = vadd.f32 %v1283, %v1340
  %v1342 = vpop.f32.mrf.mxu0
  %v1343 = vadd.f32 %v1283, %v1342
  %1344 = vmatmul.bf16.gmra.mxu0 %v1307
  %v1345 = vpop.f32.mrf.mxu0
  %v1346 = vadd.f32 %v1283, %v1345
  %v1347 = vpop.f32.mrf.mxu0
  %v1348 = vadd.f32 %v1283, %v1347
  %1349 = vmatmul.bf16.gmra.mxu0 %v1310
  %v1350 = vpop.f32.mrf.mxu0
  %v1351 = vadd.f32 %v1283, %v1350
  %v1352 = vpop.f32.mrf.mxu0
  %v1353 = vadd.f32 %v1283, %v1352
  %1354 = vmatmul.bf16.gmra.mxu0 %v1313
  %v1355 = vpop.f32.mrf.mxu0
  %v1356 = vadd.f32 %v1283, %v1355
  %v1357 = vpop.f32.mrf.mxu0
  %v1358 = vadd.f32 %v1283, %v1357
  %1359 = vmatmul.bf16.gmra.mxu0 %v1316
  %v1360 = vpop.f32.mrf.mxu0
  %v1361 = vadd.f32 %v1283, %v1360
  %v1362 = vpop.f32.mrf.mxu0
  %v1363 = vadd.f32 %v1283, %v1362
  %1364 = vmatmul.bf16.gmra.mxu0 %v1319
  %v1365 = vpop.f32.mrf.mxu0
  %v1366 = vadd.f32 %v1283, %v1365
  %v1367 = vpop.f32.mrf.mxu0
  %v1368 = vadd.f32 %v1283, %v1367
  %1369 = vdwg.mxu0
  %vm1370 = vcmask 80896
  %v1371 = vsel %vm1370, %v1331, -inf
  %1372 = vmax.xlane.f32.xlu0 %v1371
  %v1373 = vpop.xlane.xlu0 %1372
  %v1374 = vsel %vm1370, %v1333, -inf
  %1375 = vmax.xlane.f32.xlu0 %v1374
  %v1376 = vpop.xlane.xlu0 %1375
  %v1377 = vsel %vm1370, %v1336, -inf
  %1378 = vmax.xlane.f32.xlu0 %v1377
  %v1379 = vpop.xlane.xlu0 %1378
  %v1380 = vsel %vm1370, %v1338, -inf
  %1381 = vmax.xlane.f32.xlu0 %v1380
  %v1382 = vpop.xlane.xlu0 %1381
  %v1383 = vsel %vm1370, %v1341, -inf
  %1384 = vmax.xlane.f32.xlu0 %v1383
  %v1385 = vpop.xlane.xlu0 %1384
  %v1386 = vsel %vm1370, %v1343, -inf
  %1387 = vmax.xlane.f32.xlu0 %v1386
  %v1388 = vpop.xlane.xlu0 %1387
  %v1389 = vsel %vm1370, %v1346, -inf
  %1390 = vmax.xlane.f32.xlu0 %v1389
  %v1391 = vpop.xlane.xlu0 %1390
  %v1392 = vsel %vm1370, %v1348, -inf
  %1393 = vmax.xlane.f32.xlu0 %v1392
  %v1394 = vpop.xlane.xlu0 %1393
  %v1395 = vsel %vm1370, %v1351, -inf
  %1396 = vmax.xlane.f32.xlu0 %v1395
  %v1397 = vpop.xlane.xlu0 %1396
  %v1398 = vsel %vm1370, %v1353, -inf
  %1399 = vmax.xlane.f32.xlu0 %v1398
  %v1400 = vpop.xlane.xlu0 %1399
  %v1401 = vsel %vm1370, %v1356, -inf
  %1402 = vmax.xlane.f32.xlu0 %v1401
  %v1403 = vpop.xlane.xlu0 %1402
  %v1404 = vsel %vm1370, %v1358, -inf
  %1405 = vmax.xlane.f32.xlu0 %v1404
  %v1406 = vpop.xlane.xlu0 %1405
  %v1407 = vsel %vm1370, %v1361, -inf
  %1408 = vmax.xlane.f32.xlu0 %v1407
  %v1409 = vpop.xlane.xlu0 %1408
  %v1410 = vsel %vm1370, %v1363, -inf
  %1411 = vmax.xlane.f32.xlu0 %v1410
  %v1412 = vpop.xlane.xlu0 %1411
  %v1413 = vsel %vm1370, %v1366, -inf
  %1414 = vmax.xlane.f32.xlu0 %v1413
  %v1415 = vpop.xlane.xlu0 %1414
  %v1416 = vsel %vm1370, %v1368, -inf
  %1417 = vmax.xlane.f32.xlu0 %v1416
  %v1418 = vpop.xlane.xlu0 %1417
  %v1419 = vsub.f32 %v1331, %v1373
  %v1420 = vsub.f32 %v1333, %v1376
  %v1421 = vsub.f32 %v1336, %v1379
  %v1422 = vsub.f32 %v1338, %v1382
  %v1423 = vsub.f32 %v1341, %v1385
  %v1424 = vsub.f32 %v1343, %v1388
  %v1425 = vsub.f32 %v1346, %v1391
  %v1426 = vsub.f32 %v1348, %v1394
  %v1427 = vsub.f32 %v1351, %v1397
  %v1428 = vsub.f32 %v1353, %v1400
  %v1429 = vsub.f32 %v1356, %v1403
  %v1430 = vsub.f32 %v1358, %v1406
  %v1431 = vsub.f32 %v1361, %v1409
  %v1432 = vsub.f32 %v1363, %v1412
  %v1433 = vsub.f32 %v1366, %v1415
  %v1434 = vsub.f32 %v1368, %v1418
  %v1435 = vmul.f32 %v1419, 1.442695
  %v1436 = vpow.pop %v1435
  %v1437 = vmul.f32 %v1420, 1.442695
  %v1438 = vpow.pop %v1437
  %v1439 = vmul.f32 %v1421, 1.442695
  %v1440 = vpow.pop %v1439
  %v1441 = vmul.f32 %v1422, 1.442695
  %v1442 = vpow.pop %v1441
  %v1443 = vmul.f32 %v1423, 1.442695
  %v1444 = vpow.pop %v1443
  %v1445 = vmul.f32 %v1424, 1.442695
  %v1446 = vpow.pop %v1445
  %v1447 = vmul.f32 %v1425, 1.442695
  %v1448 = vpow.pop %v1447
  %v1449 = vmul.f32 %v1426, 1.442695
  %v1450 = vpow.pop %v1449
  %v1451 = vmul.f32 %v1427, 1.442695
  %v1452 = vpow.pop %v1451
  %v1453 = vmul.f32 %v1428, 1.442695
  %v1454 = vpow.pop %v1453
  %v1455 = vmul.f32 %v1429, 1.442695
  %v1456 = vpow.pop %v1455
  %v1457 = vmul.f32 %v1430, 1.442695
  %v1458 = vpow.pop %v1457
  %v1459 = vmul.f32 %v1431, 1.442695
  %v1460 = vpow.pop %v1459
  %v1461 = vmul.f32 %v1432, 1.442695
  %v1462 = vpow.pop %v1461
  %v1463 = vmul.f32 %v1433, 1.442695
  %v1464 = vpow.pop %v1463
  %v1465 = vmul.f32 %v1434, 1.442695
  %v1466 = vpow.pop %v1465
  %v1467 = vsel %vm1370, %v1436, 0.0
  %1468 = vadd.xlane.f32.xlu0 %v1467
  %v1469 = vpop.xlane.xlu0 %1468
  %v1470 = vsel %vm1370, %v1438, 0.0
  %1471 = vadd.xlane.f32.xlu0 %v1470
  %v1472 = vpop.xlane.xlu0 %1471
  %v1473 = vsel %vm1370, %v1440, 0.0
  %1474 = vadd.xlane.f32.xlu0 %v1473
  %v1475 = vpop.xlane.xlu0 %1474
  %v1476 = vsel %vm1370, %v1442, 0.0
  %1477 = vadd.xlane.f32.xlu0 %v1476
  %v1478 = vpop.xlane.xlu0 %1477
  %v1479 = vsel %vm1370, %v1444, 0.0
  %1480 = vadd.xlane.f32.xlu0 %v1479
  %v1481 = vpop.xlane.xlu0 %1480
  %v1482 = vsel %vm1370, %v1446, 0.0
  %1483 = vadd.xlane.f32.xlu0 %v1482
  %v1484 = vpop.xlane.xlu0 %1483
  %v1485 = vsel %vm1370, %v1448, 0.0
  %1486 = vadd.xlane.f32.xlu0 %v1485
  %v1487 = vpop.xlane.xlu0 %1486
  %v1488 = vsel %vm1370, %v1450, 0.0
  %1489 = vadd.xlane.f32.xlu0 %v1488
  %v1490 = vpop.xlane.xlu0 %1489
  %v1491 = vsel %vm1370, %v1452, 0.0
  %1492 = vadd.xlane.f32.xlu0 %v1491
  %v1493 = vpop.xlane.xlu0 %1492
  %v1494 = vsel %vm1370, %v1454, 0.0
  %1495 = vadd.xlane.f32.xlu0 %v1494
  %v1496 = vpop.xlane.xlu0 %1495
  %v1497 = vsel %vm1370, %v1456, 0.0
  %1498 = vadd.xlane.f32.xlu0 %v1497
  %v1499 = vpop.xlane.xlu0 %1498
  %v1500 = vsel %vm1370, %v1458, 0.0
  %1501 = vadd.xlane.f32.xlu0 %v1500
  %v1502 = vpop.xlane.xlu0 %1501
  %v1503 = vsel %vm1370, %v1460, 0.0
  %1504 = vadd.xlane.f32.xlu0 %v1503
  %v1505 = vpop.xlane.xlu0 %1504
  %v1506 = vsel %vm1370, %v1462, 0.0
  %1507 = vadd.xlane.f32.xlu0 %v1506
  %v1508 = vpop.xlane.xlu0 %1507
  %v1509 = vsel %vm1370, %v1464, 0.0
  %1510 = vadd.xlane.f32.xlu0 %v1509
  %v1511 = vpop.xlane.xlu0 %1510
  %v1512 = vsel %vm1370, %v1466, 0.0
  %1513 = vadd.xlane.f32.xlu0 %v1512
  %v1514 = vpop.xlane.xlu0 %1513
  %v1515 = vlog2.pop %v1469
  %v1516 = vmul.f32 %v1515, 0.6931472
  %v1517 = vlog2.pop %v1472
  %v1518 = vmul.f32 %v1517, 0.6931472
  %v1519 = vlog2.pop %v1475
  %v1520 = vmul.f32 %v1519, 0.6931472
  %v1521 = vlog2.pop %v1478
  %v1522 = vmul.f32 %v1521, 0.6931472
  %v1523 = vlog2.pop %v1481
  %v1524 = vmul.f32 %v1523, 0.6931472
  %v1525 = vlog2.pop %v1484
  %v1526 = vmul.f32 %v1525, 0.6931472
  %v1527 = vlog2.pop %v1487
  %v1528 = vmul.f32 %v1527, 0.6931472
  %v1529 = vlog2.pop %v1490
  %v1530 = vmul.f32 %v1529, 0.6931472
  %v1531 = vlog2.pop %v1493
  %v1532 = vmul.f32 %v1531, 0.6931472
  %v1533 = vlog2.pop %v1496
  %v1534 = vmul.f32 %v1533, 0.6931472
  %v1535 = vlog2.pop %v1499
  %v1536 = vmul.f32 %v1535, 0.6931472
  %v1537 = vlog2.pop %v1502
  %v1538 = vmul.f32 %v1537, 0.6931472
  %v1539 = vlog2.pop %v1505
  %v1540 = vmul.f32 %v1539, 0.6931472
  %v1541 = vlog2.pop %v1508
  %v1542 = vmul.f32 %v1541, 0.6931472
  %v1543 = vlog2.pop %v1511
  %v1544 = vmul.f32 %v1543, 0.6931472
  %v1545 = vlog2.pop %v1514
  %v1546 = vmul.f32 %v1545, 0.6931472
  %v1547 = vsub.f32 %v1419, %v1516
  %v1548 = vsub.f32 %v1420, %v1518
  %v1549 = vsub.f32 %v1421, %v1520
  %v1550 = vsub.f32 %v1422, %v1522
  %v1551 = vsub.f32 %v1423, %v1524
  %v1552 = vsub.f32 %v1424, %v1526
  %v1553 = vsub.f32 %v1425, %v1528
  %v1554 = vsub.f32 %v1426, %v1530
  %v1555 = vsub.f32 %v1427, %v1532
  %v1556 = vsub.f32 %v1428, %v1534
  %v1557 = vsub.f32 %v1429, %v1536
  %v1558 = vsub.f32 %v1430, %v1538
  %v1559 = vsub.f32 %v1431, %v1540
  %v1560 = vsub.f32 %v1432, %v1542
  %v1561 = vsub.f32 %v1433, %v1544
  %v1562 = vsub.f32 %v1434, %v1546
  %1563 = vxpose.xlu0.b32.start [1/16] %v1547, 128
  %1564 = vxpose.xlu0.b32.cont [2/16] %v1548, 128
  %1565 = vxpose.xlu0.b32.cont [3/16] %v1549, 128
  %1566 = vxpose.xlu0.b32.cont [4/16] %v1550, 128
  %1567 = vxpose.xlu0.b32.cont [5/16] %v1551, 128
  %1568 = vxpose.xlu0.b32.cont [6/16] %v1552, 128
  %1569 = vxpose.xlu0.b32.cont [7/16] %v1553, 128
  %1570 = vxpose.xlu0.b32.cont [8/16] %v1554, 128
  %1571 = vxpose.xlu0.b32.cont [9/16] %v1555, 128
  %1572 = vxpose.xlu0.b32.cont [10/16] %v1556, 128
  %1573 = vxpose.xlu0.b32.cont [11/16] %v1557, 128
  %1574 = vxpose.xlu0.b32.cont [12/16] %v1558, 128
  %1575 = vxpose.xlu0.b32.cont [13/16] %v1559, 128
  %1576 = vxpose.xlu0.b32.cont [14/16] %v1560, 128
  %1577 = vxpose.xlu0.b32.cont [15/16] %v1561, 128
  %1578 = vxpose.xlu0.b32.end [16/16] %v1562, 128
  %v1579 = vpop.trf.xlu0
  %v1580 = vpop.trf.xlu0
  %v1581 = vpop.trf.xlu0
  %v1582 = vpop.trf.xlu0
  %v1583 = vpop.trf.xlu0
  %v1584 = vpop.trf.xlu0
  %v1585 = vpop.trf.xlu0
  %v1586 = vpop.trf.xlu0
  %v1587 = vpop.trf.xlu0
  %v1588 = vpop.trf.xlu0
  %v1589 = vpop.trf.xlu0
  %v1590 = vpop.trf.xlu0
  %v1591 = vpop.trf.xlu0
  %v1592 = vpop.trf.xlu0
  %v1593 = vpop.trf.xlu0
  %v1594 = vpop.trf.xlu0
  %1595 = vst [vmem:[%s7] sm:$0xff] %v1579
  %1596 = vst [vmem:[%s7 + $0x8] sm:$0x3] %v1580
  // Predicated region
  $region30: #{custom_mlp_forward.1} parent=0 // pred_check
    _
  $region31: #{custom_mlp_forward.1} parent=0 // pred_check_branch
    %1598 = sbr.rel (0) target = $region33
  $region32: #{custom_mlp_forward.1} parent=0 // pred_region
    _
  $region33: #{custom_mlp_forward.1} parent=0 // pred_fallthru
    _
  // Predicated region
  $region34: #{custom_mlp_forward.1} parent=0 // pred_check
    _
  $region35: #{custom_mlp_forward.1} parent=0 // pred_check_branch
    %1600 = sbr.rel (0) target = $region37
  $region36: #{custom_mlp_forward.1} parent=0 // pred_region
    _
  $region37: #{custom_mlp_forward.1} parent=0 // pred_fallthru
    _

</llo_original>
